<compile_context>
chip_gen: v7x
topology: tpu7x:2x2x1
jax: 0.10.0
libtpu: 0.0.40
codegen_flags: <defaults>
</compile_context>

<pallas_src>
import functools

import jax
import jax.numpy as jnp
from jax import lax
from jax.experimental import pallas as pl
from jax.experimental.pallas import tpu as pltpu


def _focal_dice_kernel(x_ref, t_ref, out_ref,
                       acc_focal, acc_union, acc_inter,
                       *, alpha_f, gamma):
    """Per-tile focal/dice partial sums over a (C, ROWS, 128) block."""
    n = pl.program_id(0)
    r = pl.program_id(1)

    @pl.when((n == 0) & (r == 0))
    def _():
        acc_focal[...] = jnp.zeros_like(acc_focal)
        acc_union[...] = jnp.zeros_like(acc_union)
        acc_inter[...] = jnp.zeros_like(acc_inter)

    x = x_ref[0].astype(jnp.float32)   # (C, ROWS, 128) logits
    t = t_ref[0].astype(jnp.float32)   # (C, ROWS, 128) soft targets

    # log-softmax over the (small) leading class axis: C-1 elementwise
    # max/add passes over dense (ROWS, 128) slabs; pixels stay lane/sublane
    # dense, no cross-lane work.
    m = jnp.max(x, axis=0, keepdims=True)                    # (1, ROWS, 128)
    z = jnp.exp(x - m)                                       # (C, ROWS, 128)
    lse = m + jnp.log(jnp.sum(z, axis=0, keepdims=True))     # (1, ROWS, 128)

    # cross_entropy(reduction='none') with probability targets:
    #   ce = -sum_c t_c * (x_c - lse) = sum_c t_c * (lse - x_c)
    ce = jnp.sum(t * (lse - x), axis=0)                      # (ROWS, 128)

    pt = jnp.exp(-ce)
    q = jnp.maximum(1.0 - pt, 0.0)       # clamp: pt can exceed 1 by fp eps
    if float(gamma) == int(gamma):
        qg = lax.integer_pow(q, int(gamma))                  # no exp/log pow
    else:
        qg = q ** jnp.float32(gamma)
    focal = alpha_f * qg * ce                                # (ROWS, 128)

    # Fold the class axis before accumulating -> accumulator RMW traffic is
    # pixel-shaped, not (C, pixels)-shaped.  Pure VPU adds, no reductions.
    acc_focal[...] += focal
    acc_union[...] += jnp.sum(x + t, axis=0)
    acc_inter[...] += jnp.sum(x * t, axis=0)

    @pl.when((n == pl.num_programs(0) - 1) & (r == pl.num_programs(1) - 1))
    def _():
        focal_sum = jnp.sum(acc_focal[...])
        union_sum = jnp.sum(acc_union[...])
        inter_sum = jnp.sum(acc_inter[...])
        lane = lax.broadcasted_iota(jnp.int32, out_ref.shape, 1)
        vals = jnp.where(lane == 0, focal_sum,
               jnp.where(lane == 1, inter_sum,
               jnp.where(lane == 2, union_sum, 0.0)))
        out_ref[...] = vals.astype(out_ref.dtype)


def focal_dice(preds, targets, *, alpha=1.0, gamma=3.0, focal_alpha=1.0,
               smooth=1e-6, target_block_bytes=2 << 20):
    """preds, targets: NCHW float arrays (targets are per-class probabilities)."""
    N, C, H, W = preds.shape
    assert targets.shape == preds.shape
    P = H * W

    # Pixel axis laid out as (rows of 128 lanes).
    R = pl.cdiv(P, 128)

    # Row tile: full extent when small, otherwise ~target_block_bytes per input
    # block, rounded to a multiple of 8 sublanes.
    max_rows = max(8, (target_block_bytes // (C * 128 * 4)) // 8 * 8)
    if R <= max_rows:
        tile_rows = R
        R_pad = R
    else:
        tile_rows = max_rows
        R_pad = pl.cdiv(R, tile_rows) * tile_rows
    P_pad = R_pad * 128
    num_row_tiles = R_pad // tile_rows

    x = preds.reshape(N, C, P)
    t = targets.reshape(N, C, P)
    if P_pad != P:
        # One-time zero pad (only for irregular spatial sizes).  Zero logits +
        # zero targets contribute exactly 0 to every accumulated quantity, so
        # no in-kernel masking is needed.
        pad = ((0, 0), (0, 0), (0, P_pad - P))
        x = jnp.pad(x, pad)
        t = jnp.pad(t, pad)
    x = x.reshape(N, C, R_pad, 128)
    t = t.reshape(N, C, R_pad, 128)

    kernel = functools.partial(_focal_dice_kernel,
                               alpha_f=float(focal_alpha),
                               gamma=float(gamma))

    in_block = (1, C, tile_rows, 128)
    in_block_bytes = C * tile_rows * 128 * x.dtype.itemsize
    acc_bytes = tile_rows * 128 * 4
    needed = 2 * 2 * in_block_bytes + 3 * acc_bytes + (1 << 16)
    vmem_limit = int(min(48 << 20, max(20 << 20, 2 * needed)))

    out = pl.pallas_call(
        kernel,
        out_shape=jax.ShapeDtypeStruct((1, 128), jnp.float32),
        grid_spec=pltpu.PrefetchScalarGridSpec(
            num_scalar_prefetch=0,
            grid=(N, num_row_tiles),
            in_specs=[pl.BlockSpec(in_block, lambda n, r: (n, 0, r, 0)),
                      pl.BlockSpec(in_block, lambda n, r: (n, 0, r, 0))],
            out_specs=pl.BlockSpec((1, 128), lambda n, r: (0, 0)),
            scratch_shapes=[pltpu.VMEM((tile_rows, 128), jnp.float32),  # focal
                            pltpu.VMEM((tile_rows, 128), jnp.float32),  # x + t
                            pltpu.VMEM((tile_rows, 128), jnp.float32)], # x * t
        ),
        compiler_params=pltpu.CompilerParams(
            dimension_semantics=("arbitrary", "arbitrary"),
            vmem_limit_bytes=vmem_limit),
    )(x, t)

    focal_mean = out[0, 0] / jnp.float32(N * P)   # mean over N*H*W pixels
    intersection = out[0, 1]
    union = out[0, 2]
    dice = (2.0 * intersection + smooth) / (union + smooth)
    dice_l = 1.0 - dice
    return jnp.float32(alpha) * focal_mean + jnp.float32(1.0 - alpha) * dice_l


def _focal_dice_ref(preds, targets, *, alpha=1.0, gamma=3.0, focal_alpha=1.0,
                    smooth=1e-6):
    """Pure-JAX reference matching the PyTorch module."""
    lsm = jax.nn.log_softmax(preds, axis=1)                 # NCHW, softmax over C
    ce = -jnp.sum(targets * lsm, axis=1)                    # (N, H, W)
    pt = jnp.exp(-ce)
    focal = jnp.mean(focal_alpha * (1.0 - pt) ** gamma * ce)
    inter = jnp.sum(preds * targets)
    union = jnp.sum(preds) + jnp.sum(targets)
    dice_l = 1.0 - (2.0 * inter + smooth) / (union + smooth)
    return alpha * focal + (1.0 - alpha) * dice_l


if __name__ == "__main__":
    key = jax.random.PRNGKey(0)
    k1, k2 = jax.random.split(key)

    N, C, H, W = 2, 4, 16, 16
    preds = jax.random.normal(k1, (N, C, H, W), dtype=jnp.float32)      # logits
    # Soft (probability) targets over the class dimension, as required for the
    # elementwise preds*targets in dice_loss and soft-target cross_entropy.
    targets = jax.nn.softmax(jax.random.normal(k2, (N, C, H, W),
                                               dtype=jnp.float32), axis=1)

    # Default module config (alpha=1, gamma=3).
    out1 = jax.block_until_ready(focal_dice(preds, targets, alpha=1.0, gamma=3.0))
    ref1 = _focal_dice_ref(preds, targets, alpha=1.0, gamma=3.0)
    assert jnp.allclose(out1, ref1, rtol=1e-5, atol=1e-5), (out1, ref1)

    # Mixed focal/dice weighting to exercise the dice path too.
    out2 = jax.block_until_ready(focal_dice(preds, targets, alpha=0.5, gamma=3.0))
    ref2 = _focal_dice_ref(preds, targets, alpha=0.5, gamma=3.0)
    assert jnp.allclose(out2, ref2, rtol=1e-5, atol=1e-5), (out2, ref2)

    print("KERNEL_OK")
</pallas_src>

<mosaic_0001>
module attributes {stable_mosaic.version = 11 : i64} {
  func.func @_focal_dice_kernel(%arg0: i32, %arg1: i32, %arg2: memref<1x4x2x128xf32, #tpu.memory_space<vmem>>, %arg3: memref<1x4x2x128xf32, #tpu.memory_space<vmem>>, %arg4: memref<1x128xf32, #tpu.memory_space<vmem>>, %arg5: memref<2x128xf32, #tpu.memory_space<vmem>>, %arg6: memref<2x128xf32, #tpu.memory_space<vmem>>, %arg7: memref<2x128xf32, #tpu.memory_space<vmem>>) attributes {dimension_semantics = [#tpu.dimension_semantics<arbitrary>, #tpu.dimension_semantics<arbitrary>], iteration_bounds = array<i64: 2, 1>, scalar_prefetch = 0 : i64, scratch_operands = 3 : i64, tpu.core_type = #tpu.core_type<tc>, window_params = [{transform_indices = @transform_0, window_bounds = array<i64: 1, 4, 2, 128>}, {transform_indices = @transform_1, window_bounds = array<i64: 1, 4, 2, 128>}, {pipeline_mode = #tpu.pipeline_mode<synchronous>, transform_indices = @transform_2, window_bounds = array<i64: 1, 128>}]} {
    %c0_i32 = arith.constant 0 : i32
    %0 = arith.cmpi eq, %arg0, %c0_i32 : i32
    %c0_i32_0 = arith.constant 0 : i32
    %1 = arith.cmpi eq, %arg1, %c0_i32_0 : i32
    %2 = arith.andi %0, %1 : i1
    %3 = arith.extui %2 : i1 to i32
    %c0_i32_1 = arith.constant 0 : i32
    %4 = arith.cmpi ne, %3, %c0_i32_1 : i32
    scf.if %4 {
      %cst_31 = arith.constant 0.000000e+00 : f32
      %52 = vector.broadcast %cst_31 : f32 to vector<2x128xf32>
      %c0_32 = arith.constant 0 : index
      %c0_33 = arith.constant 0 : index
      %53 = vector.load %arg5[%c0_32, %c0_33] : memref<2x128xf32, #tpu.memory_space<vmem>>, vector<2x128xf32>
      tpu.vector_store %arg5[%c0_32, %c0_33], %52 {strides = array<i32>} : memref<2x128xf32, #tpu.memory_space<vmem>>, vector<2x128xf32>,
      %cst_34 = arith.constant 0.000000e+00 : f32
      %54 = vector.broadcast %cst_34 : f32 to vector<2x128xf32>
      %c0_35 = arith.constant 0 : index
      %c0_36 = arith.constant 0 : index
      %55 = vector.load %arg6[%c0_35, %c0_36] : memref<2x128xf32, #tpu.memory_space<vmem>>, vector<2x128xf32>
      tpu.vector_store %arg6[%c0_35, %c0_36], %54 {strides = array<i32>} : memref<2x128xf32, #tpu.memory_space<vmem>>, vector<2x128xf32>,
      %cst_37 = arith.constant 0.000000e+00 : f32
      %56 = vector.broadcast %cst_37 : f32 to vector<2x128xf32>
      %c0_38 = arith.constant 0 : index
      %c0_39 = arith.constant 0 : index
      %57 = vector.load %arg7[%c0_38, %c0_39] : memref<2x128xf32, #tpu.memory_space<vmem>>, vector<2x128xf32>
      tpu.vector_store %arg7[%c0_38, %c0_39], %56 {strides = array<i32>} : memref<2x128xf32, #tpu.memory_space<vmem>>, vector<2x128xf32>,
    } else {
    }
    %c0 = arith.constant 0 : index
    %c0_2 = arith.constant 0 : index
    %c0_3 = arith.constant 0 : index
    %c0_4 = arith.constant 0 : index
    %5 = vector.load %arg2[%c0, %c0_2, %c0_3, %c0_4] : memref<1x4x2x128xf32, #tpu.memory_space<vmem>>, vector<1x4x2x128xf32>
    %6 = vector.shape_cast %5 : vector<1x4x2x128xf32> to vector<4x2x128xf32>
    %c0_5 = arith.constant 0 : index
    %c0_6 = arith.constant 0 : index
    %c0_7 = arith.constant 0 : index
    %c0_8 = arith.constant 0 : index
    %7 = vector.load %arg3[%c0_5, %c0_6, %c0_7, %c0_8] : memref<1x4x2x128xf32, #tpu.memory_space<vmem>>, vector<1x4x2x128xf32>
    %8 = vector.shape_cast %7 : vector<1x4x2x128xf32> to vector<4x2x128xf32>
    %cst = arith.constant dense<0xFF800000> : vector<2x128xf32>
    %9 = vector.multi_reduction <maximumf>, %6, %cst [0] : vector<4x2x128xf32> to vector<2x128xf32>
    %10 = vector.shape_cast %9 : vector<2x128xf32> to vector<1x2x128xf32>
    %11 = vector.broadcast %10 : vector<1x2x128xf32> to vector<4x2x128xf32>
    %12 = arith.subf %6, %11 : vector<4x2x128xf32>
    %13 = math.exp %12 : vector<4x2x128xf32>
    %cst_9 = arith.constant dense<0.000000e+00> : vector<2x128xf32>
    %14 = vector.multi_reduction <add>, %13, %cst_9 [0] : vector<4x2x128xf32> to vector<2x128xf32>
    %15 = vector.shape_cast %14 : vector<2x128xf32> to vector<1x2x128xf32>
    %16 = math.log %15 : vector<1x2x128xf32>
    %17 = arith.addf %10, %16 : vector<1x2x128xf32>
    %18 = vector.broadcast %17 : vector<1x2x128xf32> to vector<4x2x128xf32>
    %19 = arith.subf %18, %6 : vector<4x2x128xf32>
    %20 = arith.mulf %8, %19 : vector<4x2x128xf32>
    %cst_10 = arith.constant dense<0.000000e+00> : vector<2x128xf32>
    %21 = vector.multi_reduction <add>, %20, %cst_10 [0] : vector<4x2x128xf32> to vector<2x128xf32>
    %cst_11 = arith.constant 0.000000e+00 : f32
    %22 = vector.broadcast %cst_11 : f32 to vector<2x128xf32>
    %23 = arith.subf %22, %21 : vector<2x128xf32>
    %24 = math.exp %23 : vector<2x128xf32>
    %cst_12 = arith.constant 1.000000e+00 : f32
    %25 = vector.broadcast %cst_12 : f32 to vector<2x128xf32>
    %26 = arith.subf %25, %24 : vector<2x128xf32>
    %cst_13 = arith.constant 0.000000e+00 : f32
    %27 = vector.broadcast %cst_13 : f32 to vector<2x128xf32>
    %28 = arith.maximumf %26, %27 : vector<2x128xf32>
    %29 = arith.mulf %28, %28 : vector<2x128xf32>
    %30 = arith.mulf %28, %29 : vector<2x128xf32>
    %cst_14 = arith.constant 1.000000e+00 : f32
    %31 = vector.broadcast %cst_14 : f32 to vector<2x128xf32>
    %32 = arith.mulf %31, %30 : vector<2x128xf32>
    %33 = arith.mulf %32, %21 : vector<2x128xf32>
    %c0_15 = arith.constant 0 : index
    %c0_16 = arith.constant 0 : index
    %34 = vector.load %arg5[%c0_15, %c0_16] : memref<2x128xf32, #tpu.memory_space<vmem>>, vector<2x128xf32>
    %35 = arith.addf %34, %33 : vector<2x128xf32>
    %c0_17 = arith.constant 0 : index
    %c0_18 = arith.constant 0 : index
    %36 = vector.load %arg5[%c0_17, %c0_18] : memref<2x128xf32, #tpu.memory_space<vmem>>, vector<2x128xf32>
    tpu.vector_store %arg5[%c0_17, %c0_18], %35 {strides = array<i32>} : memref<2x128xf32, #tpu.memory_space<vmem>>, vector<2x128xf32>,
    %c0_19 = arith.constant 0 : index
    %c0_20 = arith.constant 0 : index
    %37 = vector.load %arg6[%c0_19, %c0_20] : memref<2x128xf32, #tpu.memory_space<vmem>>, vector<2x128xf32>
    %38 = arith.addf %6, %8 : vector<4x2x128xf32>
    %cst_21 = arith.constant dense<0.000000e+00> : vector<2x128xf32>
    %39 = vector.multi_reduction <add>, %38, %cst_21 [0] : vector<4x2x128xf32> to vector<2x128xf32>
    %40 = arith.addf %37, %39 : vector<2x128xf32>
    %c0_22 = arith.constant 0 : index
    %c0_23 = arith.constant 0 : index
    %41 = vector.load %arg6[%c0_22, %c0_23] : memref<2x128xf32, #tpu.memory_space<vmem>>, vector<2x128xf32>
    tpu.vector_store %arg6[%c0_22, %c0_23], %40 {strides = array<i32>} : memref<2x128xf32, #tpu.memory_space<vmem>>, vector<2x128xf32>,
    %c0_24 = arith.constant 0 : index
    %c0_25 = arith.constant 0 : index
    %42 = vector.load %arg7[%c0_24, %c0_25] : memref<2x128xf32, #tpu.memory_space<vmem>>, vector<2x128xf32>
    %43 = arith.mulf %6, %8 : vector<4x2x128xf32>
    %cst_26 = arith.constant dense<0.000000e+00> : vector<2x128xf32>
    %44 = vector.multi_reduction <add>, %43, %cst_26 [0] : vector<4x2x128xf32> to vector<2x128xf32>
    %45 = arith.addf %42, %44 : vector<2x128xf32>
    %c0_27 = arith.constant 0 : index
    %c0_28 = arith.constant 0 : index
    %46 = vector.load %arg7[%c0_27, %c0_28] : memref<2x128xf32, #tpu.memory_space<vmem>>, vector<2x128xf32>
    tpu.vector_store %arg7[%c0_27, %c0_28], %45 {strides = array<i32>} : memref<2x128xf32, #tpu.memory_space<vmem>>, vector<2x128xf32>,
    %c1_i32 = arith.constant 1 : i32
    %47 = arith.cmpi eq, %arg0, %c1_i32 : i32
    %c0_i32_29 = arith.constant 0 : i32
    %48 = arith.cmpi eq, %arg1, %c0_i32_29 : i32
    %49 = arith.andi %47, %48 : i1
    %50 = arith.extui %49 : i1 to i32
    %c0_i32_30 = arith.constant 0 : i32
    %51 = arith.cmpi ne, %50, %c0_i32_30 : i32
    scf.if %51 {
      %c0_31 = arith.constant 0 : index
      %c0_32 = arith.constant 0 : index
      %52 = vector.load %arg5[%c0_31, %c0_32] : memref<2x128xf32, #tpu.memory_space<vmem>>, vector<2x128xf32>
      %53 = vector.shape_cast %52 : vector<2x128xf32> to vector<1x2x128xf32>
      %cst_33 = arith.constant dense<0.000000e+00> : vector<1xf32>
      %54 = vector.multi_reduction <add>, %53, %cst_33 [1, 2] : vector<1x2x128xf32> to vector<1xf32>
      %55 = vector.shape_cast %54 : vector<1xf32> to vector<1x1x1xf32>
      %56 = vector.extract %55[0, 0, 0] : f32 from vector<1x1x1xf32>
      %c0_34 = arith.constant 0 : index
      %c0_35 = arith.constant 0 : index
      %57 = vector.load %arg6[%c0_34, %c0_35] : memref<2x128xf32, #tpu.memory_space<vmem>>, vector<2x128xf32>
      %58 = vector.shape_cast %57 : vector<2x128xf32> to vector<1x2x128xf32>
      %cst_36 = arith.constant dense<0.000000e+00> : vector<1xf32>
      %59 = vector.multi_reduction <add>, %58, %cst_36 [1, 2] : vector<1x2x128xf32> to vector<1xf32>
      %60 = vector.shape_cast %59 : vector<1xf32> to vector<1x1x1xf32>
      %61 = vector.extract %60[0, 0, 0] : f32 from vector<1x1x1xf32>
      %c0_37 = arith.constant 0 : index
      %c0_38 = arith.constant 0 : index
      %62 = vector.load %arg7[%c0_37, %c0_38] : memref<2x128xf32, #tpu.memory_space<vmem>>, vector<2x128xf32>
      %63 = vector.shape_cast %62 : vector<2x128xf32> to vector<1x2x128xf32>
      %cst_39 = arith.constant dense<0.000000e+00> : vector<1xf32>
      %64 = vector.multi_reduction <add>, %63, %cst_39 [1, 2] : vector<1x2x128xf32> to vector<1xf32>
      %65 = vector.shape_cast %64 : vector<1xf32> to vector<1x1x1xf32>
      %66 = vector.extract %65[0, 0, 0] : f32 from vector<1x1x1xf32>
      %67 = tpu.iota {dimensions = array<i32: 1>} : vector<1x128xi32>
      %c0_i32_40 = arith.constant 0 : i32
      %68 = vector.broadcast %c0_i32_40 : i32 to vector<1x128xi32>
      %69 = arith.cmpi eq, %67, %68 : vector<1x128xi32>
      %c1_i32_41 = arith.constant 1 : i32
      %70 = vector.broadcast %c1_i32_41 : i32 to vector<1x128xi32>
      %71 = arith.cmpi eq, %67, %70 : vector<1x128xi32>
      %c2_i32 = arith.constant 2 : i32
      %72 = vector.broadcast %c2_i32 : i32 to vector<1x128xi32>
      %73 = arith.cmpi eq, %67, %72 : vector<1x128xi32>
      %cst_42 = arith.constant 0.000000e+00 : f32
      %74 = vector.broadcast %61 : f32 to vector<1x128xf32>
      %75 = vector.broadcast %cst_42 : f32 to vector<1x128xf32>
      %76 = arith.select %73, %74, %75 : vector<1x128xi1>, vector<1x128xf32>
      %77 = vector.broadcast %66 : f32 to vector<1x128xf32>
      %78 = arith.select %71, %77, %76 : vector<1x128xi1>, vector<1x128xf32>
      %79 = vector.broadcast %56 : f32 to vector<1x128xf32>
      %80 = arith.select %69, %79, %78 : vector<1x128xi1>, vector<1x128xf32>
      %c0_43 = arith.constant 0 : index
      %c0_44 = arith.constant 0 : index
      %81 = vector.load %arg4[%c0_43, %c0_44] : memref<1x128xf32, #tpu.memory_space<vmem>>, vector<1x128xf32>
      tpu.vector_store %arg4[%c0_43, %c0_44], %80 {strides = array<i32>} : memref<1x128xf32, #tpu.memory_space<vmem>>, vector<1x128xf32>,
    } else {
    }
    return
  }
  func.func @transform_0(%arg0: i32, %arg1: i32) -> (i32, i32, i32, i32) {
    %c0_i32 = arith.constant 0 : i32
    %c0_i32_0 = arith.constant 0 : i32
    %c0_i32_1 = arith.constant 0 : i32
    return %arg0, %c0_i32, %arg1, %c0_i32_0 : i32, i32, i32, i32
  }
  func.func @transform_1(%arg0: i32, %arg1: i32) -> (i32, i32, i32, i32) {
    %c0_i32 = arith.constant 0 : i32
    %c0_i32_0 = arith.constant 0 : i32
    %c0_i32_1 = arith.constant 0 : i32
    return %arg0, %c0_i32, %arg1, %c0_i32_0 : i32, i32, i32, i32
  }
  func.func @transform_2(%arg0: i32, %arg1: i32) -> (i32, i32) {
    %c0_i32 = arith.constant 0 : i32
    %c0_i32_0 = arith.constant 0 : i32
    %c0_i32_1 = arith.constant 0 : i32
    return %c0_i32, %c0_i32_0 : i32, i32
  }
}

</mosaic_0001>

<llo_original>
// kernel: tpu_custom_call.1
$region0: #{tpu_custom_call.1}
  #allocation0 [shape = 'u32[]', space=smem, size = 0x4, offset = 0x4, fixed_abs, tag = 'smem constant byte address 0x4 - core index']
  #allocation1 [shape = 'u32[144,128]{1,0:T(1,128)}', space=vmem, size = 0x12000, scoped, tag = 'internal scratch']
  #allocation2 [shape = 'f32[2,128]{1,0:T(2,128)}', space=vmem, size = 0x400, scoped, tag = 'scratch operand']
  #allocation3 [shape = 'f32[2,128]{1,0:T(2,128)}', space=vmem, size = 0x400, scoped, tag = 'scratch operand']
  #allocation4 [shape = 'f32[2,128]{1,0:T(2,128)}', space=vmem, size = 0x400, scoped, tag = 'scratch operand']
  %s0 = inlined_call_operand.hbm [shape: f32[2,4,2,128], index: 0, kind: input, shape index: {}]
  %s1 = inlined_call_operand.hbm [shape: f32[2,4,2,128], index: 1, kind: input, shape index: {}]
  %s2 = inlined_call_operand.hbm [shape: f32[1,128], index: 2, kind: output, shape index: {}]
  %s3 = sld [smem:[#allocation0]]
  $region57: #{tpu_custom_call.1} parent=0
    _
  %s5 = ssub.s32 1, %s3
  %s6 = scalar_select 0, %s5, %s3
  $region1: #{tpu_custom_call.1} parent=0
    #allocation5 [shape = 'u8[8192]{0}', space=vmem, size = 0x2000, scoped, tag = 'input window, operand 0']
    #allocation6 [shape = 's32[2]{0}', space=sflag, size = 0x8, scoped, tag = 'scoped memory for tpu_custom_call.1']
    #allocation7 [shape = 's32[2]{0}', space=sflag, size = 0x8, scoped, tag = 'scoped memory for tpu_custom_call.1']
    #allocation8 [shape = 'u8[8192]{0}', space=vmem, size = 0x2000, scoped, tag = 'input window, operand 1']
    #allocation9 [shape = 's32[2]{0}', space=sflag, size = 0x8, scoped, tag = 'scoped memory for tpu_custom_call.1']
    #allocation10 [shape = 'u8[512]{0}', space=vmem, size = 0x400, scoped, tag = 'output window, operand 0, single buffered']
    %7 = vsyncpa [#allocation6], 0
    %s8 = scalar_lea.sflag [#allocation6], 1
    %9 = vsyncpa %s8, 0
    %10 = vsyncpa [#allocation9], 0
    %s11 = scalar_lea.sflag [#allocation9], 1
    %12 = vsyncpa %s11, 0
    %13 = vsyncpa [#allocation7], 0
    loop: start=0, step=1, limit=4
    $region2: #{tpu_custom_call.1} parent=1 // loop_pre_header
      _
    $region3: #{tpu_custom_call.1} parent=1 // loop_header
      %s15 = sphi 0, %s19
      %p16 = scmp.ge.s32.totalorder %s15, 4
      %s22 = sphi 0, %s34
      %s23 = sphi 0, %s30
      %s24 = sphi 0, %s22
      %s25 = sphi 0, %s23
      %s26 = sphi 0, %s24
      %s27 = sphi 0, %s25
      %s39 = sphi 0, %s41
      %s42 = sphi 0, %s39
      %s43 = sphi 0, %s42
      %s59 = sphi 0, %s43
      %s67 = sphi 0, %s69
      %s70 = sphi 0, %s67
      %s71 = sphi 0, %s70
      %s87 = sphi 0, %s71
      %s91 = sphi 0, %s91
      %s93 = sphi 0, %s91
      %s94 = sphi 0, %s93
      %s108 = sphi 0, %s94
    $region4: #{tpu_custom_call.1} parent=1 // loop_header_branch
      %18 = sbr.rel (%p16) target = $region8
    $region5: #{tpu_custom_call.1} parent=1 // loop_body
      %s20 = ssub.s32 %s15, 1
      %s21 = ssub.s32 %s15, 2
      %s28 = sadd.s32 1, %s23
      %p29 = scmp.ge.s32.totalorder %s28, 1
      %s30 = scalar_select %p29, 0, %s28
      %s31 = sadd.s32 1, %s22
      %s32 = scalar_select %p29, %s31, %s22
      %p33 = scmp.ge.s32.totalorder %s32, 2
      %s34 = scalar_select %p33, 0, %s32
      %s35 = ssub.s32 %s22, %s34
      %s36 = ssub.s32 %s23, %s30
      %s37 = sor.u32 %s35, %s36
      %p38 = scmp.eq.s32.totalorder %s37, 0
      %s40 = sadd.s32 %s39, 1
      %s41 = scalar_select %p38, %s39, %s40
      %p44 = pneg %p38
      %p45 = scmp.eq.s32.totalorder %s15, 1
      %p46 = por %p44, %p45
      %p47 = scmp.ne.s32.totalorder %s39, %s42
      %p48 = scmp.eq.s32.totalorder %s15, 0
      %p49 = por %p47, %p48
      %p50 = scmp.ne.s32.totalorder %s39, %s42
      %p51 = scmp.eq.s32.totalorder %s20, 1
      %p52 = por %p50, %p51
      %p53 = scmp.ne.s32.totalorder %s42, %s43
      %p54 = scmp.eq.s32.totalorder %s20, 0
      %p55 = por %p53, %p54
      %p56 = scmp.ne.s32.totalorder %s42, %s43
      %p57 = scmp.eq.s32.totalorder %s21, 1
      %p58 = por %p56, %p57
      %p60 = scmp.ne.s32.totalorder %s43, %s59
      %p61 = scmp.eq.s32.totalorder %s21, 0
      %p62 = por %p60, %p61
      %s63 = ssub.s32 %s22, %s34
      %s64 = ssub.s32 %s23, %s30
      %s65 = sor.u32 %s63, %s64
      %p66 = scmp.eq.s32.totalorder %s65, 0
      %s68 = sadd.s32 %s67, 1
      %s69 = scalar_select %p66, %s67, %s68
      %p72 = pneg %p66
      %p73 = scmp.eq.s32.totalorder %s15, 1
      %p74 = por %p72, %p73
      %p75 = scmp.ne.s32.totalorder %s67, %s70
      %p76 = scmp.eq.s32.totalorder %s15, 0
      %p77 = por %p75, %p76
      %p78 = scmp.ne.s32.totalorder %s67, %s70
      %p79 = scmp.eq.s32.totalorder %s20, 1
      %p80 = por %p78, %p79
      %p81 = scmp.ne.s32.totalorder %s70, %s71
      %p82 = scmp.eq.s32.totalorder %s20, 0
      %p83 = por %p81, %p82
      %p84 = scmp.ne.s32.totalorder %s70, %s71
      %p85 = scmp.eq.s32.totalorder %s21, 1
      %p86 = por %p84, %p85
      %p88 = scmp.ne.s32.totalorder %s71, %s87
      %p89 = scmp.eq.s32.totalorder %s21, 0
      %p90 = por %p88, %p89
      %s92 = sadd.s32 %s91, 1
      %p95 = scmp.eq.s32.totalorder %s15, 1
      %p96 = scmp.ne.s32.totalorder %s91, %s93
      %p97 = scmp.eq.s32.totalorder %s15, 0
      %p98 = por %p96, %p97
      %p99 = scmp.ne.s32.totalorder %s91, %s93
      %p100 = scmp.eq.s32.totalorder %s20, 1
      %p101 = por %p99, %p100
      %p102 = scmp.ne.s32.totalorder %s93, %s94
      %p103 = scmp.eq.s32.totalorder %s20, 0
      %p104 = por %p102, %p103
      %p105 = scmp.ne.s32.totalorder %s93, %s94
      %p106 = scmp.eq.s32.totalorder %s21, 1
      %p107 = por %p105, %p106
      %p109 = scmp.ne.s32.totalorder %s94, %s108
      %p110 = scmp.eq.s32.totalorder %s21, 0
      %p111 = por %p109, %p110
      %p112 = scmp.le.s32.totalorder 1, %s15
      %p113 = scmp.lt.s32.totalorder %s15, 3
      %p114 = pnand %p112, %p113
      %p115 = pneg %p114
      // Predicated region
      $region9: #{tpu_custom_call.1} parent=5 // pred_check
        _
      $region10: #{tpu_custom_call.1} parent=5 // pred_check_branch
        %117 = sbr.rel (%p114) target = $region12
      $region11: #{tpu_custom_call.1} parent=5 // pred_region
        %s118 = ssub.s32 %s15, 1
      $region12: #{tpu_custom_call.1} parent=5 // pred_fallthru
        _
      %p119 = scmp.lt.s32.totalorder %s15, 2
      // Predicated region
      $region13: #{tpu_custom_call.1} parent=5 // pred_check
        %p120 = pneg %p119
      $region14: #{tpu_custom_call.1} parent=5 // pred_check_branch
        %122 = sbr.rel (%p120) target = $region16
      $region15: #{tpu_custom_call.1} parent=5 // pred_region
        // Predicated region
        $region17: #{tpu_custom_call.1} parent=15 // pred_check
          %p123 = pneg %p49
        $region18: #{tpu_custom_call.1} parent=15 // pred_check_branch
          %125 = sbr.rel (%p123) target = $region20
        $region19: #{tpu_custom_call.1} parent=15 // pred_region
          %s126 = sand.u32 %s39, 1
          %s127 = scalar_lea.sflag [#allocation6], %s126
          %s128 = sand.u32 %s39, 1
          %s129 = smul.addr %s128, 8
          %s130 = scalar_lea.vmem [#allocation5], %s129
          %s132 = ssub.s32 128, 128
          %133 = vsyncadd %s127, %s132
          %s134 = smul.addr %s22, 4
          %s135 = sadd.s32 %s23, %s134
          %s136 = smul.addr %s135, 32
          %s137 = scalar_lea.hbm %s0, %s136
          %s138 = sshll.u32 %s130, 4
          %s139 = int_to_ptr.vmem [resolvable:$true] %s138
          %144 = dma.hbm_to_vmem [thread:$0]  %s137, 128, %s139, %s127, 32, 32, 2
        $region20: #{tpu_custom_call.1} parent=15 // pred_fallthru
          _
        // Predicated region
        $region21: #{tpu_custom_call.1} parent=15 // pred_check
          %p145 = pneg %p77
        $region22: #{tpu_custom_call.1} parent=15 // pred_check_branch
          %147 = sbr.rel (%p145) target = $region24
        $region23: #{tpu_custom_call.1} parent=15 // pred_region
          %s148 = sand.u32 %s67, 1
          %s149 = scalar_lea.sflag [#allocation9], %s148
          %s150 = sand.u32 %s67, 1
          %s151 = smul.addr %s150, 8
          %s152 = scalar_lea.vmem [#allocation8], %s151
          %s154 = ssub.s32 128, 128
          %155 = vsyncadd %s149, %s154
          %s156 = smul.addr %s22, 4
          %s157 = sadd.s32 %s23, %s156
          %s158 = smul.addr %s157, 32
          %s159 = scalar_lea.hbm %s1, %s158
          %s160 = sshll.u32 %s152, 4
          %s161 = int_to_ptr.vmem [resolvable:$true] %s160
          %166 = dma.hbm_to_vmem [thread:$0]  %s159, 128, %s161, %s149, 32, 32, 2
        $region24: #{tpu_custom_call.1} parent=15 // pred_fallthru
          _
      $region16: #{tpu_custom_call.1} parent=5 // pred_fallthru
        _
      %p167 = scmp.le.s32.totalorder 1, %s15
      %p168 = scmp.lt.s32.totalorder %s15, 3
      %p169 = pnand %p167, %p168
      %p170 = pneg %p169
      // Predicated region
      $region25: #{tpu_custom_call.1} parent=5 // pred_check
        _
      $region26: #{tpu_custom_call.1} parent=5 // pred_check_branch
        %172 = sbr.rel (%p169) target = $region28
      $region27: #{tpu_custom_call.1} parent=5 // pred_region
        %s173 = ssub.s32 %s15, 1
        %s174 = sand.u32 %s42, 1
        %s175 = scalar_lea.sflag [#allocation6], %s174
        %s176 = sand.u32 %s42, 1
        %s177 = smul.addr %s176, 8
        %s178 = scalar_lea.vmem [#allocation5], %s177
        // Predicated region
        $region29: #{tpu_custom_call.1} parent=27 // pred_check
          %p179 = pneg %p55
        $region30: #{tpu_custom_call.1} parent=27 // pred_check_branch
          %181 = sbr.rel (%p179) target = $region32
        $region31: #{tpu_custom_call.1} parent=27 // pred_region
          %182 = dma.done %s175, 128
        $region32: #{tpu_custom_call.1} parent=27 // pred_fallthru
          _
        %s183 = sand.u32 %s70, 1
        %s184 = scalar_lea.sflag [#allocation9], %s183
        %s185 = sand.u32 %s70, 1
        %s186 = smul.addr %s185, 8
        %s187 = scalar_lea.vmem [#allocation8], %s186
        // Predicated region
        $region33: #{tpu_custom_call.1} parent=27 // pred_check
          %p188 = pneg %p83
        $region34: #{tpu_custom_call.1} parent=27 // pred_check_branch
          %190 = sbr.rel (%p188) target = $region36
        $region35: #{tpu_custom_call.1} parent=27 // pred_region
          %191 = dma.done %s184, 128
        $region36: #{tpu_custom_call.1} parent=27 // pred_fallthru
          _
        %s192 = sand.u32 %s42, 1
        %s193 = scalar_lea.sflag [#allocation6], %s192
        %s194 = sand.u32 %s42, 1
        %s195 = smul.addr %s194, 8
        %s196 = scalar_lea.vmem [#allocation5], %s195
        %p197 = pneg %p55
        %p198 = pneg %p52
        %s199 = sand.u32 %s70, 1
        %s200 = scalar_lea.sflag [#allocation9], %s199
        %s201 = sand.u32 %s70, 1
        %s202 = smul.addr %s201, 8
        %s203 = scalar_lea.vmem [#allocation8], %s202
        %p204 = pneg %p83
        %p205 = pneg %p80
        %p206 = pneg %p104
        %p207 = pneg %p101
        %p208 = scmp.eq.s32.totalorder %s24, 0
        %p209 = scmp.eq.s32.totalorder %s25, 0
        %p210 = pnand %p208, %p209
        %p211 = pneg %p210
        // Predicated region
        $region37: #{tpu_custom_call.1} parent=27 // pred_check
          _
        $region38: #{tpu_custom_call.1} parent=27 // pred_check_branch
          %213 = sbr.rel (%p210) target = $region40
        $region39: #{tpu_custom_call.1} parent=27 // pred_region
          %214 = vst [vmem:[#allocation2] sm:$0x3] 0.0
          %215 = vst [vmem:[#allocation3] sm:$0x3] 0.0
          %216 = vst [vmem:[#allocation4] sm:$0x3] 0.0
        $region40: #{tpu_custom_call.1} parent=27 // pred_fallthru
          _
        %v217 = vld [vmem:[%s178] sm:$0x3]
        %v218 = vld [vmem:[%s178 + $0x2] sm:$0x3]
        %v219 = vld [vmem:[%s178 + $0x4] sm:$0x3]
        %v220 = vld [vmem:[%s178 + $0x6] sm:$0x3]
        %v221 = vld [vmem:[%s187] sm:$0x3]
        %v222 = vld [vmem:[%s187 + $0x2] sm:$0x3]
        %v223 = vld [vmem:[%s187 + $0x4] sm:$0x3]
        %v224 = vld [vmem:[%s187 + $0x6] sm:$0x3]
        %vm225 = vcmask 1041408
        %v226 = vsel %vm225, %v217, -inf
        %v227 = vsel %vm225, %v218, -inf
        %v228 = vsel %vm225, %v219, -inf
        %v229 = vsel %vm225, %v220, -inf
        %v230 = vmax.f32 %v226, %v227
        %v231 = vmax.f32 %v228, %v229
        %v232 = vmax.f32 %v230, %v231
        %v233 = vsub.f32 %v217, %v232
        %v234 = vsub.f32 %v218, %v232
        %v235 = vsub.f32 %v219, %v232
        %v236 = vsub.f32 %v220, %v232
        %v237 = vmul.f32 %v233, 1.442695
        %v238 = vpow.pop %v237
        %v239 = vmul.f32 %v234, 1.442695
        %v240 = vpow.pop %v239
        %v241 = vmul.f32 %v235, 1.442695
        %v242 = vpow.pop %v241
        %v243 = vmul.f32 %v236, 1.442695
        %v244 = vpow.pop %v243
        %v245 = vsel %vm225, %v238, 0.0
        %v246 = vsel %vm225, %v240, 0.0
        %v247 = vadd.f32 %v245, %v246
        %v248 = vsel %vm225, %v242, 0.0
        %v249 = vadd.f32 %v247, %v248
        %v250 = vsel %vm225, %v244, 0.0
        %v251 = vadd.f32 %v249, %v250
        %v252 = vlog2.pop %v251
        %v253 = vmul.f32 %v252, 0.6931472
        %v254 = vadd.f32 %v232, %v253
        %v255 = vsub.f32 %v254, %v217
        %v256 = vsub.f32 %v254, %v218
        %v257 = vsub.f32 %v254, %v219
        %v258 = vsub.f32 %v254, %v220
        %v259 = vmul.f32 %v221, %v255
        %v260 = vmul.f32 %v222, %v256
        %v261 = vmul.f32 %v223, %v257
        %v262 = vmul.f32 %v224, %v258
        %v263 = vsel %vm225, %v259, 0.0
        %v264 = vsel %vm225, %v260, 0.0
        %v265 = vadd.f32 %v263, %v264
        %v266 = vsel %vm225, %v261, 0.0
        %v267 = vadd.f32 %v265, %v266
        %v268 = vsel %vm225, %v262, 0.0
        %v269 = vadd.f32 %v267, %v268
        %v270 = vsub.f32 0.0, %v269
        %v271 = vmul.f32 %v270, 1.442695
        %v272 = vpow.pop %v271
        %v273 = vsub.f32 1.0, %v272
        %v274 = vmax.f32 %v273, 0.0
        %v275 = vmul.f32 %v274, %v274
        %v276 = vmul.f32 %v274, %v275
        %v277 = vmul.f32 %v276, %v269
        %v278 = vld [vmem:[#allocation2] sm:$0x3]
        %v279 = vadd.f32 %v278, %v277
        %280 = vst [vmem:[#allocation2] sm:$0x3] %v279
        %v281 = vld [vmem:[#allocation3] sm:$0x3]
        %v282 = vadd.f32 %v217, %v221
        %v283 = vadd.f32 %v218, %v222
        %v284 = vadd.f32 %v219, %v223
        %v285 = vadd.f32 %v220, %v224
        %v286 = vsel %vm225, %v282, 0.0
        %v287 = vsel %vm225, %v283, 0.0
        %v288 = vadd.f32 %v286, %v287
        %v289 = vsel %vm225, %v284, 0.0
        %v290 = vadd.f32 %v288, %v289
        %v291 = vsel %vm225, %v285, 0.0
        %v292 = vadd.f32 %v290, %v291
        %v293 = vadd.f32 %v281, %v292
        %294 = vst [vmem:[#allocation3] sm:$0x3] %v293
        %v295 = vld [vmem:[#allocation4] sm:$0x3]
        %v296 = vmul.f32 %v217, %v221
        %v297 = vmul.f32 %v218, %v222
        %v298 = vmul.f32 %v219, %v223
        %v299 = vmul.f32 %v220, %v224
        %v300 = vsel %vm225, %v296, 0.0
        %v301 = vsel %vm225, %v297, 0.0
        %v302 = vadd.f32 %v300, %v301
        %v303 = vsel %vm225, %v298, 0.0
        %v304 = vadd.f32 %v302, %v303
        %v305 = vsel %vm225, %v299, 0.0
        %v306 = vadd.f32 %v304, %v305
        %v307 = vadd.f32 %v295, %v306
        %308 = vst [vmem:[#allocation4] sm:$0x3] %v307
        %p309 = scmp.eq.s32.totalorder %s24, 1
        %p310 = pnand %p309, %p209
        %p311 = pneg %p310
        // Predicated region
        $region41: #{tpu_custom_call.1} parent=27 // pred_check
          _
        $region42: #{tpu_custom_call.1} parent=27 // pred_check_branch
          %313 = sbr.rel (%p310) target = $region44
        $region43: #{tpu_custom_call.1} parent=27 // pred_region
          %v314 = vld [vmem:[#allocation2] sm:$0x3]
          %v315 = vsel %vm225, %v314, 0.0
          %316 = vadd.xlane.f32.xlu0 %v315
          %v317 = vpop.xlane.xlu0 %316
          %v318 = vrot.slane %v317, 4
          %v319 = vadd.f32 %v317, %v318
          %v320 = vrot.slane %v319, 2
          %v321 = vadd.f32 %v319, %v320
          %v322 = vrot.slane %v321, 1
          %v323 = vadd.f32 %v321, %v322
          %s324 = vtos %v323
          %v325 = vld [vmem:[#allocation3] sm:$0x3]
          %v326 = vsel %vm225, %v325, 0.0
          %327 = vadd.xlane.f32.xlu0 %v326
          %v328 = vpop.xlane.xlu0 %327
          %v329 = vrot.slane %v328, 4
          %v330 = vadd.f32 %v328, %v329
          %v331 = vrot.slane %v330, 2
          %v332 = vadd.f32 %v330, %v331
          %v333 = vrot.slane %v332, 1
          %v334 = vadd.f32 %v332, %v333
          %s335 = vtos %v334
          %v336 = vld [vmem:[#allocation4] sm:$0x3]
          %v337 = vsel %vm225, %v336, 0.0
          %338 = vadd.xlane.f32.xlu0 %v337
          %v339 = vpop.xlane.xlu0 %338
          %v340 = vrot.slane %v339, 4
          %v341 = vadd.f32 %v339, %v340
          %v342 = vrot.slane %v341, 2
          %v343 = vadd.f32 %v341, %v342
          %v344 = vrot.slane %v343, 1
          %v345 = vadd.f32 %v343, %v344
          %s346 = vtos %v345
          %v347 = vlaneseq
          %v348 = vand.u32 %v347, 127
          %vm349 = vcmp.eq.s32.totalorder %v348, 0
          %vm350 = vcmp.eq.s32.totalorder %v348, 1
          %vm351 = vcmp.eq.s32.totalorder %v348, 2
          %v352 = vstv %s335
          %v353 = vsel %vm351, %v352, 0.0
          %v354 = vstv %s346
          %v355 = vsel %vm350, %v354, %v353
          %v356 = vstv %s324
          %v357 = vsel %vm349, %v356, %v355
          %358 = vst [vmem:[#allocation10] sm:$0x1] %v357
        $region44: #{tpu_custom_call.1} parent=27 // pred_fallthru
          _
        // Predicated region
        $region45: #{tpu_custom_call.1} parent=27 // pred_check
          %p359 = pneg %p101
        $region46: #{tpu_custom_call.1} parent=27 // pred_check_branch
          %361 = sbr.rel (%p359) target = $region48
        $region47: #{tpu_custom_call.1} parent=27 // pred_region
          %s363 = ssub.s32 16, 16
          %364 = vsyncadd [#allocation7], %s363
          %s366 = sshll.u32 [#allocation10], 4
          %s367 = int_to_ptr.vmem [resolvable:$true] %s366
          %369 = dma.vmem_to_hbm [thread:$0]  %s367, 16, %s2, [#allocation7]
        $region48: #{tpu_custom_call.1} parent=27 // pred_fallthru
          _
        // Predicated region
        $region49: #{tpu_custom_call.1} parent=27 // pred_check
          %p370 = pneg %p101
        $region50: #{tpu_custom_call.1} parent=27 // pred_check_branch
          %372 = sbr.rel (%p370) target = $region52
        $region51: #{tpu_custom_call.1} parent=27 // pred_region
          %373 = dma.done [#allocation7], 16
        $region52: #{tpu_custom_call.1} parent=27 // pred_fallthru
          _
      $region28: #{tpu_custom_call.1} parent=5 // pred_fallthru
        _
      %p374 = scmp.le.s32.totalorder 2, %s15
      // Predicated region
      $region53: #{tpu_custom_call.1} parent=5 // pred_check
        %p375 = pneg %p374
      $region54: #{tpu_custom_call.1} parent=5 // pred_check_branch
        %377 = sbr.rel (%p375) target = $region56
      $region55: #{tpu_custom_call.1} parent=5 // pred_region
        %s378 = ssub.s32 %s15, 2
      $region56: #{tpu_custom_call.1} parent=5 // pred_fallthru
        _
    $region6: #{tpu_custom_call.1} parent=1 // loop_footer
      %s19 = sadd.s32 1, %s15
    $region7: #{tpu_custom_call.1} parent=1 // loop_footer_branch
      %14 = sbr.rel target = $region3
    $region8: #{tpu_custom_call.1} parent=1 // loop_exit
      _
    %379 = vsyncpa [#allocation6], 1
    %s380 = scalar_lea.sflag [#allocation6], 1
    %381 = vsyncpa %s380, 1
    %382 = vsyncpa [#allocation9], 1
    %s383 = scalar_lea.sflag [#allocation9], 1
    %384 = vsyncpa %s383, 1
    %385 = vsyncpa [#allocation7], 1
    %s386 = scalar_lea.sflag [#allocation7], 1
    %387 = vsyncpa %s386, 1

</llo_original>
